<compile_context>
chip_gen: v5e
topology: v5e:2x2
jax: 0.10.0
libtpu: 0.0.40
codegen_flags: <defaults>
</compile_context>

<pallas_src>
import functools

import numpy as np
import jax
import jax.numpy as jnp
from jax.experimental import pallas as pl
from jax.experimental.pallas import tpu as pltpu

_EPS_F32 = np.float32(np.finfo(np.float32).eps)
_TEN_OVER_LN10 = np.float32(10.0 / np.log(10.0))


# --------------------------- shared kernel math ---------------------------

def _partial_grams(p0, p1, t0, t1, m):
    """16 per-row partial reductions over the current time chunk.

    Order: [sum(p0), sum(p1), sum(t0), sum(t1), sum(m),
            <p0,p0>, <p1,p1>, <t0,t0>, <t1,t1>, <m,m>,
            <p0,t0>, <p0,t1>, <p1,t0>, <p1,t1>, <m,t0>, <m,t1>]   (raw, uncentered)
    """
    def rsum(x):
        return jnp.sum(x, axis=-1, keepdims=True)

    return [
        rsum(p0), rsum(p1), rsum(t0), rsum(t1), rsum(m),
        rsum(p0 * p0), rsum(p1 * p1), rsum(t0 * t0), rsum(t1 * t1), rsum(m * m),
        rsum(p0 * t0), rsum(p0 * t1), rsum(p1 * t0), rsum(p1 * t1),
        rsum(m * t0), rsum(m * t1),
    ]


def _finalize_columns(cols, inv_t):
    """From 16 raw Gram columns -> (bt, 8): [s00,s01,s10,s11,sm0,sm1,0,0]."""
    (sp0, sp1, st0, st1, sm,
     pp0r, pp1r, tt0r, tt1r, mmr,
     d00r, d01r, d10r, d11r, dm0r, dm1r) = cols
    eps = _EPS_F32

    def center(raw, sa, sb):
        # <a - mean(a), b - mean(b)> = <a, b> - sum(a) * sum(b) / T
        return raw - sa * sb * inv_t

    tt0 = center(tt0r, st0, st0)
    tt1 = center(tt1r, st1, st1)
    pp0 = center(pp0r, sp0, sp0)
    pp1 = center(pp1r, sp1, sp1)
    mm = center(mmr, sm, sm)
    d00 = center(d00r, sp0, st0)
    d01 = center(d01r, sp0, st1)
    d10 = center(d10r, sp1, st0)
    d11 = center(d11r, sp1, st1)
    dm0 = center(dm0r, sm, st0)
    dm1 = center(dm1r, sm, st1)

    def sisdr(dot, tt, pp):
        # alpha = (<p,t>+eps)/(<t,t>+eps)
        # num   = ||alpha*t||^2     + eps = alpha^2*tt + eps
        # den   = ||alpha*t - p||^2 + eps = alpha^2*tt - 2*alpha*<p,t> + ||p||^2 + eps
        alpha = (dot + eps) / (tt + eps)
        a_tt = alpha * alpha * tt
        num = a_tt + eps
        den = jnp.maximum(a_tt - 2.0 * alpha * dot + pp, 0.0) + eps
        return _TEN_OVER_LN10 * jnp.log(num / den)

    s00 = sisdr(d00, tt0, pp0)
    s01 = sisdr(d01, tt1, pp0)
    s10 = sisdr(d10, tt0, pp1)
    s11 = sisdr(d11, tt1, pp1)
    sm0 = sisdr(dm0, tt0, mm)
    sm1 = sisdr(dm1, tt1, mm)
    pad = jnp.zeros_like(s00)
    return jnp.concatenate([s00, s01, s10, s11, sm0, sm1, pad, pad], axis=-1)


# ------------------------------- kernels ----------------------------------

def _si_sdr_tiled_kernel(p0_ref, p1_ref, t0_ref, t1_ref, m_ref, out_ref, acc_ref,
                         *, inv_t):
    """Time-tiled path: grid = (batch blocks, time blocks)."""
    j = pl.program_id(1)

    @pl.when(j == 0)
    def _():
        acc_ref[...] = jnp.zeros_like(acc_ref)

    parts = _partial_grams(p0_ref[...], p1_ref[...], t0_ref[...], t1_ref[...],
                           m_ref[...])
    acc_ref[...] += jnp.concatenate(parts, axis=-1)

    @pl.when(j == pl.num_programs(1) - 1)
    def _():
        acc = acc_ref[...]
        cols = [acc[:, k:k + 1] for k in range(16)]
        out_ref[...] = _finalize_columns(cols, inv_t).astype(out_ref.dtype)


def _si_sdr_full_kernel(pt_ref, tg_ref, m_ref, out_ref, *, time):
    """Fallback path (T % 128 != 0): whole time extent per step, in-kernel split."""
    p = pt_ref[...]
    t = tg_ref[...]
    m = m_ref[...]
    p0, p1 = p[:, :time], p[:, time:]
    t0, t1 = t[:, :time], t[:, time:]
    parts = _partial_grams(p0, p1, t0, t1, m)
    out_ref[...] = _finalize_columns(parts, 1.0 / time).astype(out_ref.dtype)


# ------------------------------ block sizing ------------------------------

def _vmem_budget():
    """Returns (per-step VMEM budget, vmem_limit_bytes, two TensorCores per chip)."""
    budget, limit, two_tc = 20 << 20, 32 << 20, True      # v7x-safe defaults
    try:
        info = pltpu.get_tpu_info()
        cap = int(info.vmem_capacity_bytes)
        if cap >= (100 << 20):                             # v5e / v6e: 128 MiB, 1 TC
            budget, limit, two_tc = 64 << 20, 96 << 20, False
    except Exception:
        pass
    return budget, limit, two_tc


def _plan_blocks_tiled(batch, time, budget, two_tc):
    """Pick (bt, tT): bt multiple of 8, tT a multiple of 128 dividing T."""
    b8 = 8 * ((batch + 7) // 8)
    bt = b8
    if two_tc and b8 >= 16:
        # keep >= 2 batch grid steps so the "parallel" axis shards across both TCs
        bt = 8 * (((b8 // 2) + 7) // 8)

    # Per grid step: 5 inputs x 2 (double-buffered) + ~3 block-sized temporaries.
    def fits(bt_, tt_):
        return 13 * bt_ * tt_ * 4 <= budget

    while bt > 8 and not fits(bt, 128):
        bt = max(8, 8 * (((bt // 2) + 7) // 8))

    m = time // 128
    dmax = max(1, min(m, budget // (13 * bt * 4 * 128)))
    d = 1
    for cand in range(dmax, 0, -1):
        if m % cand == 0:
            d = cand
            break
    return bt, d * 128


def _plan_block_full(batch, time, budget, two_tc):
    b8 = 8 * ((batch + 7) // 8)
    per_row = 17 * time * 4    # 5T floats x2 (double-buffered) + ~7T of temporaries
    bt = max(8, (budget // max(per_row, 1)) // 8 * 8)
    bt = min(bt, b8)
    if two_tc and b8 >= 16 and bt >= b8:
        bt = 8 * (((b8 // 2) + 7) // 8)
    return bt


# -------------------------------- wrapper ----------------------------------

def si_sdri(preds, target, mix):
    """preds, target: [B, 2, T]; mix: [B, T] -> scalar float32 SI-SDR improvement."""
    preds = jnp.asarray(preds, jnp.float32)
    target = jnp.asarray(target, jnp.float32)
    mix = jnp.asarray(mix, jnp.float32)

    B, S, T = preds.shape
    assert S == 2, "SI_SDRi assumes 2 speakers (mix.repeat(1, 2, 1))"
    assert target.shape == (B, S, T) and mix.shape == (B, T)

    # Free row-major reshape (no HBM copy, unlike strided speaker slices).
    preds2 = preds.reshape(B, 2 * T)
    target2 = target.reshape(B, 2 * T)

    budget, vmem_limit, two_tc = _vmem_budget()
    cost = pl.CostEstimate(flops=int(32 * B * T),
                           transcendentals=int(6 * B),
                           bytes_accessed=int(5 * B * T * 4 + B * 32))

    if T % 128 == 0:
        bt, tT = _plan_blocks_tiled(B, T, budget, two_tc)
        n_b = pl.cdiv(B, bt)
        n_t = T // tT

        spk0_spec = pl.BlockSpec((bt, tT), lambda i, j: (i, j))
        spk1_spec = pl.BlockSpec((bt, tT), lambda i, j, n=n_t: (i, j + n))
        mix_spec = pl.BlockSpec((bt, tT), lambda i, j: (i, j))

        vals = pl.pallas_call(
            functools.partial(_si_sdr_tiled_kernel, inv_t=1.0 / T),
            out_shape=jax.ShapeDtypeStruct((B, 8), jnp.float32),
            grid_spec=pltpu.PrefetchScalarGridSpec(
                num_scalar_prefetch=0,
                grid=(n_b, n_t),
                in_specs=[spk0_spec, spk1_spec, spk0_spec, spk1_spec, mix_spec],
                out_specs=pl.BlockSpec((bt, 8), lambda i, j: (i, 0)),
                scratch_shapes=[pltpu.VMEM((bt, 16), jnp.float32)]),
            compiler_params=pltpu.CompilerParams(
                dimension_semantics=("parallel", "arbitrary"),
                vmem_limit_bytes=vmem_limit),
            cost_estimate=cost,
        )(preds2, preds2, target2, target2, mix)
    else:
        # TODO(synk): no time tiling on this path; fine for typical audio lengths.
        bt = _plan_block_full(B, T, budget, two_tc)
        n_b = pl.cdiv(B, bt)

        vals = pl.pallas_call(
            functools.partial(_si_sdr_full_kernel, time=T),
            out_shape=jax.ShapeDtypeStruct((B, 8), jnp.float32),
            grid_spec=pltpu.PrefetchScalarGridSpec(
                num_scalar_prefetch=0,
                grid=(n_b,),
                in_specs=[pl.BlockSpec((bt, 2 * T), lambda i: (i, 0)),
                          pl.BlockSpec((bt, 2 * T), lambda i: (i, 0)),
                          pl.BlockSpec((bt, T), lambda i: (i, 0))],
                out_specs=pl.BlockSpec((bt, 8), lambda i: (i, 0))),
            compiler_params=pltpu.CompilerParams(
                dimension_semantics=("parallel",),
                vmem_limit_bytes=vmem_limit),
            cost_estimate=cost,
        )(preds2, target2, mix)

    s00, s01, s10, s11, sm0, sm1 = (vals[:, k] for k in range(6))

    # --- tiny JAX glue: PIT over 2 speakers ('max') + batch means ---
    perm_id = 0.5 * (s00 + s11)     # (preds0,target0) + (preds1,target1)
    perm_sw = 0.5 * (s01 + s10)     # (preds0,target1) + (preds1,target0)
    si_sdr_pit = jnp.mean(jnp.maximum(perm_id, perm_sw))

    # mix repeated over the 2 speakers -> mean over all (b, s)
    si_sdr_mix_start = jnp.mean(0.5 * (sm0 + sm1))

    return si_sdr_pit - si_sdr_mix_start


# --------------------------- pure-JAX reference ----------------------------

def _si_sdr_ref(preds, target):
    eps = _EPS_F32
    target = target - jnp.mean(target, axis=-1, keepdims=True)
    preds = preds - jnp.mean(preds, axis=-1, keepdims=True)
    alpha = (jnp.sum(preds * target, axis=-1, keepdims=True) + eps) / (
        jnp.sum(target ** 2, axis=-1, keepdims=True) + eps)
    ts = alpha * target
    noise = ts - preds
    val = (jnp.sum(ts ** 2, axis=-1) + eps) / (jnp.sum(noise ** 2, axis=-1) + eps)
    return 10.0 * jnp.log10(val)


def _si_sdri_ref(preds, target, mix):
    mix_rep = jnp.repeat(mix[:, None, :], 2, axis=1)
    mix_start = jnp.mean(_si_sdr_ref(mix_rep, target))
    p_id = 0.5 * (_si_sdr_ref(preds[:, 0], target[:, 0]) +
                  _si_sdr_ref(preds[:, 1], target[:, 1]))
    p_sw = 0.5 * (_si_sdr_ref(preds[:, 0], target[:, 1]) +
                  _si_sdr_ref(preds[:, 1], target[:, 0]))
    return jnp.mean(jnp.maximum(p_id, p_sw)) - mix_start


if __name__ == "__main__":
    key = jax.random.PRNGKey(0)
    key_a, key_b = jax.random.split(key)

    def make_inputs(k, batch, time):
        k1, k2, k3 = jax.random.split(k, 3)
        target = jax.random.normal(k1, (batch, 2, time), dtype=jnp.float32)
        preds = target + 0.3 * jax.random.normal(k2, (batch, 2, time), dtype=jnp.float32)
        mix = (jnp.sum(target, axis=1)
               + 0.1 * jax.random.normal(k3, (batch, time), dtype=jnp.float32))
        return preds, target, mix

    # Path 1: T multiple of 128 (time-tiled, two-BlockSpec speaker windows).
    preds, target, mix = make_inputs(key_a, batch=2, time=256)
    out = jax.block_until_ready(si_sdri(preds, target, mix))
    ref = jax.block_until_ready(_si_sdri_ref(preds, target, mix))
    np.testing.assert_allclose(np.asarray(out), np.asarray(ref), rtol=2e-4, atol=2e-4)

    # Path 2: T not a multiple of 128 + ragged batch block (fallback kernel).
    preds, target, mix = make_inputs(key_b, batch=3, time=200)
    out = jax.block_until_ready(si_sdri(preds, target, mix))
    ref = jax.block_until_ready(_si_sdri_ref(preds, target, mix))
    np.testing.assert_allclose(np.asarray(out), np.asarray(ref), rtol=2e-4, atol=2e-4)

    print("KERNEL_OK")
</pallas_src>

<mosaic_0001>
module attributes {stable_mosaic.version = 11 : i64} {
  func.func @_si_sdr_tiled_kernel(%arg0: i32, %arg1: i32, %arg2: memref<8x256xf32, #tpu.memory_space<vmem>>, %arg3: memref<8x256xf32, #tpu.memory_space<vmem>>, %arg4: memref<8x256xf32, #tpu.memory_space<vmem>>, %arg5: memref<8x256xf32, #tpu.memory_space<vmem>>, %arg6: memref<8x256xf32, #tpu.memory_space<vmem>>, %arg7: memref<8x8xf32, #tpu.memory_space<vmem>>, %arg8: memref<8x16xf32, #tpu.memory_space<vmem>>) attributes {dimension_semantics = [#tpu.dimension_semantics<parallel>, #tpu.dimension_semantics<arbitrary>], iteration_bounds = array<i64: 1, 1>, scalar_prefetch = 0 : i64, scratch_operands = 1 : i64, tpu.core_type = #tpu.core_type<tc>, window_params = [{transform_indices = @transform_0, window_bounds = array<i64: 8, 256>}, {transform_indices = @transform_1, window_bounds = array<i64: 8, 256>}, {transform_indices = @transform_2, window_bounds = array<i64: 8, 256>}, {transform_indices = @transform_3, window_bounds = array<i64: 8, 256>}, {transform_indices = @transform_4, window_bounds = array<i64: 8, 256>}, {transform_indices = @transform_5, window_bounds = array<i64: 8, 8>}]} {
    %c0_i32 = arith.constant 0 : i32
    %0 = arith.cmpi eq, %arg1, %c0_i32 : i32
    %1 = arith.extui %0 : i1 to i32
    %c0_i32_0 = arith.constant 0 : i32
    %2 = arith.cmpi ne, %1, %c0_i32_0 : i32
    scf.if %2 {
      %cst_31 = arith.constant 0.000000e+00 : f32
      %58 = vector.broadcast %cst_31 : f32 to vector<8x16xf32>
      %c0_32 = arith.constant 0 : index
      %c0_33 = arith.constant 0 : index
      %59 = vector.load %arg8[%c0_32, %c0_33] : memref<8x16xf32, #tpu.memory_space<vmem>>, vector<8x16xf32>
      tpu.vector_store %arg8[%c0_32, %c0_33], %58 {strides = array<i32>} : memref<8x16xf32, #tpu.memory_space<vmem>>, vector<8x16xf32>,
    } else {
    }
    %c0 = arith.constant 0 : index
    %c0_1 = arith.constant 0 : index
    %3 = vector.load %arg2[%c0, %c0_1] : memref<8x256xf32, #tpu.memory_space<vmem>>, vector<8x256xf32>
    %c0_2 = arith.constant 0 : index
    %c0_3 = arith.constant 0 : index
    %4 = vector.load %arg3[%c0_2, %c0_3] : memref<8x256xf32, #tpu.memory_space<vmem>>, vector<8x256xf32>
    %c0_4 = arith.constant 0 : index
    %c0_5 = arith.constant 0 : index
    %5 = vector.load %arg4[%c0_4, %c0_5] : memref<8x256xf32, #tpu.memory_space<vmem>>, vector<8x256xf32>
    %c0_6 = arith.constant 0 : index
    %c0_7 = arith.constant 0 : index
    %6 = vector.load %arg5[%c0_6, %c0_7] : memref<8x256xf32, #tpu.memory_space<vmem>>, vector<8x256xf32>
    %c0_8 = arith.constant 0 : index
    %c0_9 = arith.constant 0 : index
    %7 = vector.load %arg6[%c0_8, %c0_9] : memref<8x256xf32, #tpu.memory_space<vmem>>, vector<8x256xf32>
    %cst = arith.constant dense<0.000000e+00> : vector<8xf32>
    %8 = vector.multi_reduction <add>, %3, %cst [1] : vector<8x256xf32> to vector<8xf32>
    %9 = vector.shape_cast %8 : vector<8xf32> to vector<8x1xf32>
    %cst_10 = arith.constant dense<0.000000e+00> : vector<8xf32>
    %10 = vector.multi_reduction <add>, %4, %cst_10 [1] : vector<8x256xf32> to vector<8xf32>
    %11 = vector.shape_cast %10 : vector<8xf32> to vector<8x1xf32>
    %cst_11 = arith.constant dense<0.000000e+00> : vector<8xf32>
    %12 = vector.multi_reduction <add>, %5, %cst_11 [1] : vector<8x256xf32> to vector<8xf32>
    %13 = vector.shape_cast %12 : vector<8xf32> to vector<8x1xf32>
    %cst_12 = arith.constant dense<0.000000e+00> : vector<8xf32>
    %14 = vector.multi_reduction <add>, %6, %cst_12 [1] : vector<8x256xf32> to vector<8xf32>
    %15 = vector.shape_cast %14 : vector<8xf32> to vector<8x1xf32>
    %cst_13 = arith.constant dense<0.000000e+00> : vector<8xf32>
    %16 = vector.multi_reduction <add>, %7, %cst_13 [1] : vector<8x256xf32> to vector<8xf32>
    %17 = vector.shape_cast %16 : vector<8xf32> to vector<8x1xf32>
    %18 = arith.mulf %3, %3 : vector<8x256xf32>
    %cst_14 = arith.constant dense<0.000000e+00> : vector<8xf32>
    %19 = vector.multi_reduction <add>, %18, %cst_14 [1] : vector<8x256xf32> to vector<8xf32>
    %20 = vector.shape_cast %19 : vector<8xf32> to vector<8x1xf32>
    %21 = arith.mulf %4, %4 : vector<8x256xf32>
    %cst_15 = arith.constant dense<0.000000e+00> : vector<8xf32>
    %22 = vector.multi_reduction <add>, %21, %cst_15 [1] : vector<8x256xf32> to vector<8xf32>
    %23 = vector.shape_cast %22 : vector<8xf32> to vector<8x1xf32>
    %24 = arith.mulf %5, %5 : vector<8x256xf32>
    %cst_16 = arith.constant dense<0.000000e+00> : vector<8xf32>
    %25 = vector.multi_reduction <add>, %24, %cst_16 [1] : vector<8x256xf32> to vector<8xf32>
    %26 = vector.shape_cast %25 : vector<8xf32> to vector<8x1xf32>
    %27 = arith.mulf %6, %6 : vector<8x256xf32>
    %cst_17 = arith.constant dense<0.000000e+00> : vector<8xf32>
    %28 = vector.multi_reduction <add>, %27, %cst_17 [1] : vector<8x256xf32> to vector<8xf32>
    %29 = vector.shape_cast %28 : vector<8xf32> to vector<8x1xf32>
    %30 = arith.mulf %7, %7 : vector<8x256xf32>
    %cst_18 = arith.constant dense<0.000000e+00> : vector<8xf32>
    %31 = vector.multi_reduction <add>, %30, %cst_18 [1] : vector<8x256xf32> to vector<8xf32>
    %32 = vector.shape_cast %31 : vector<8xf32> to vector<8x1xf32>
    %33 = arith.mulf %3, %5 : vector<8x256xf32>
    %cst_19 = arith.constant dense<0.000000e+00> : vector<8xf32>
    %34 = vector.multi_reduction <add>, %33, %cst_19 [1] : vector<8x256xf32> to vector<8xf32>
    %35 = vector.shape_cast %34 : vector<8xf32> to vector<8x1xf32>
    %36 = arith.mulf %3, %6 : vector<8x256xf32>
    %cst_20 = arith.constant dense<0.000000e+00> : vector<8xf32>
    %37 = vector.multi_reduction <add>, %36, %cst_20 [1] : vector<8x256xf32> to vector<8xf32>
    %38 = vector.shape_cast %37 : vector<8xf32> to vector<8x1xf32>
    %39 = arith.mulf %4, %5 : vector<8x256xf32>
    %cst_21 = arith.constant dense<0.000000e+00> : vector<8xf32>
    %40 = vector.multi_reduction <add>, %39, %cst_21 [1] : vector<8x256xf32> to vector<8xf32>
    %41 = vector.shape_cast %40 : vector<8xf32> to vector<8x1xf32>
    %42 = arith.mulf %4, %6 : vector<8x256xf32>
    %cst_22 = arith.constant dense<0.000000e+00> : vector<8xf32>
    %43 = vector.multi_reduction <add>, %42, %cst_22 [1] : vector<8x256xf32> to vector<8xf32>
    %44 = vector.shape_cast %43 : vector<8xf32> to vector<8x1xf32>
    %45 = arith.mulf %7, %5 : vector<8x256xf32>
    %cst_23 = arith.constant dense<0.000000e+00> : vector<8xf32>
    %46 = vector.multi_reduction <add>, %45, %cst_23 [1] : vector<8x256xf32> to vector<8xf32>
    %47 = vector.shape_cast %46 : vector<8xf32> to vector<8x1xf32>
    %48 = arith.mulf %7, %6 : vector<8x256xf32>
    %cst_24 = arith.constant dense<0.000000e+00> : vector<8xf32>
    %49 = vector.multi_reduction <add>, %48, %cst_24 [1] : vector<8x256xf32> to vector<8xf32>
    %50 = vector.shape_cast %49 : vector<8xf32> to vector<8x1xf32>
    %c0_25 = arith.constant 0 : index
    %c0_26 = arith.constant 0 : index
    %51 = vector.load %arg8[%c0_25, %c0_26] : memref<8x16xf32, #tpu.memory_space<vmem>>, vector<8x16xf32>
    %52 = tpu.concatenate %9, %11, %13, %15, %17, %20, %23, %26, %29, %32, %35, %38, %41, %44, %47, %50 in 1 : vector<8x1xf32>, vector<8x1xf32>, vector<8x1xf32>, vector<8x1xf32>, vector<8x1xf32>, vector<8x1xf32>, vector<8x1xf32>, vector<8x1xf32>, vector<8x1xf32>, vector<8x1xf32>, vector<8x1xf32>, vector<8x1xf32>, vector<8x1xf32>, vector<8x1xf32>, vector<8x1xf32>, vector<8x1xf32> -> vector<8x16xf32>
    %53 = arith.addf %51, %52 : vector<8x16xf32>
    %c0_27 = arith.constant 0 : index
    %c0_28 = arith.constant 0 : index
    %54 = vector.load %arg8[%c0_27, %c0_28] : memref<8x16xf32, #tpu.memory_space<vmem>>, vector<8x16xf32>
    tpu.vector_store %arg8[%c0_27, %c0_28], %53 {strides = array<i32>} : memref<8x16xf32, #tpu.memory_space<vmem>>, vector<8x16xf32>,
    %c0_i32_29 = arith.constant 0 : i32
    %55 = arith.cmpi eq, %arg1, %c0_i32_29 : i32
    %56 = arith.extui %55 : i1 to i32
    %c0_i32_30 = arith.constant 0 : i32
    %57 = arith.cmpi ne, %56, %c0_i32_30 : i32
    scf.if %57 {
      %c0_31 = arith.constant 0 : index
      %c0_32 = arith.constant 0 : index
      %58 = vector.load %arg8[%c0_31, %c0_32] : memref<8x16xf32, #tpu.memory_space<vmem>>, vector<8x16xf32>
      %59 = vector.extract_strided_slice %58 {offsets = [0, 0], sizes = [8, 1], strides = [1, 1]} : vector<8x16xf32> to vector<8x1xf32>
      %60 = vector.extract_strided_slice %58 {offsets = [0, 1], sizes = [8, 1], strides = [1, 1]} : vector<8x16xf32> to vector<8x1xf32>
      %61 = vector.extract_strided_slice %58 {offsets = [0, 2], sizes = [8, 1], strides = [1, 1]} : vector<8x16xf32> to vector<8x1xf32>
      %62 = vector.extract_strided_slice %58 {offsets = [0, 3], sizes = [8, 1], strides = [1, 1]} : vector<8x16xf32> to vector<8x1xf32>
      %63 = vector.extract_strided_slice %58 {offsets = [0, 4], sizes = [8, 1], strides = [1, 1]} : vector<8x16xf32> to vector<8x1xf32>
      %64 = vector.extract_strided_slice %58 {offsets = [0, 5], sizes = [8, 1], strides = [1, 1]} : vector<8x16xf32> to vector<8x1xf32>
      %65 = vector.extract_strided_slice %58 {offsets = [0, 6], sizes = [8, 1], strides = [1, 1]} : vector<8x16xf32> to vector<8x1xf32>
      %66 = vector.extract_strided_slice %58 {offsets = [0, 7], sizes = [8, 1], strides = [1, 1]} : vector<8x16xf32> to vector<8x1xf32>
      %67 = vector.extract_strided_slice %58 {offsets = [0, 8], sizes = [8, 1], strides = [1, 1]} : vector<8x16xf32> to vector<8x1xf32>
      %68 = vector.extract_strided_slice %58 {offsets = [0, 9], sizes = [8, 1], strides = [1, 1]} : vector<8x16xf32> to vector<8x1xf32>
      %69 = vector.extract_strided_slice %58 {offsets = [0, 10], sizes = [8, 1], strides = [1, 1]} : vector<8x16xf32> to vector<8x1xf32>
      %70 = vector.extract_strided_slice %58 {offsets = [0, 11], sizes = [8, 1], strides = [1, 1]} : vector<8x16xf32> to vector<8x1xf32>
      %71 = vector.extract_strided_slice %58 {offsets = [0, 12], sizes = [8, 1], strides = [1, 1]} : vector<8x16xf32> to vector<8x1xf32>
      %72 = vector.extract_strided_slice %58 {offsets = [0, 13], sizes = [8, 1], strides = [1, 1]} : vector<8x16xf32> to vector<8x1xf32>
      %73 = vector.extract_strided_slice %58 {offsets = [0, 14], sizes = [8, 1], strides = [1, 1]} : vector<8x16xf32> to vector<8x1xf32>
      %74 = vector.extract_strided_slice %58 {offsets = [0, 15], sizes = [8, 1], strides = [1, 1]} : vector<8x16xf32> to vector<8x1xf32>
      %75 = arith.mulf %61, %61 : vector<8x1xf32>
      %cst_33 = arith.constant 3.906250e-03 : f32
      %76 = vector.broadcast %cst_33 : f32 to vector<8x1xf32>
      %77 = arith.mulf %75, %76 : vector<8x1xf32>
      %78 = arith.subf %66, %77 : vector<8x1xf32>
      %79 = arith.mulf %62, %62 : vector<8x1xf32>
      %cst_34 = arith.constant 3.906250e-03 : f32
      %80 = vector.broadcast %cst_34 : f32 to vector<8x1xf32>
      %81 = arith.mulf %79, %80 : vector<8x1xf32>
      %82 = arith.subf %67, %81 : vector<8x1xf32>
      %83 = arith.mulf %59, %59 : vector<8x1xf32>
      %cst_35 = arith.constant 3.906250e-03 : f32
      %84 = vector.broadcast %cst_35 : f32 to vector<8x1xf32>
      %85 = arith.mulf %83, %84 : vector<8x1xf32>
      %86 = arith.subf %64, %85 : vector<8x1xf32>
      %87 = arith.mulf %60, %60 : vector<8x1xf32>
      %cst_36 = arith.constant 3.906250e-03 : f32
      %88 = vector.broadcast %cst_36 : f32 to vector<8x1xf32>
      %89 = arith.mulf %87, %88 : vector<8x1xf32>
      %90 = arith.subf %65, %89 : vector<8x1xf32>
      %91 = arith.mulf %63, %63 : vector<8x1xf32>
      %cst_37 = arith.constant 3.906250e-03 : f32
      %92 = vector.broadcast %cst_37 : f32 to vector<8x1xf32>
      %93 = arith.mulf %91, %92 : vector<8x1xf32>
      %94 = arith.subf %68, %93 : vector<8x1xf32>
      %95 = arith.mulf %59, %61 : vector<8x1xf32>
      %cst_38 = arith.constant 3.906250e-03 : f32
      %96 = vector.broadcast %cst_38 : f32 to vector<8x1xf32>
      %97 = arith.mulf %95, %96 : vector<8x1xf32>
      %98 = arith.subf %69, %97 : vector<8x1xf32>
      %99 = arith.mulf %59, %62 : vector<8x1xf32>
      %cst_39 = arith.constant 3.906250e-03 : f32
      %100 = vector.broadcast %cst_39 : f32 to vector<8x1xf32>
      %101 = arith.mulf %99, %100 : vector<8x1xf32>
      %102 = arith.subf %70, %101 : vector<8x1xf32>
      %103 = arith.mulf %60, %61 : vector<8x1xf32>
      %cst_40 = arith.constant 3.906250e-03 : f32
      %104 = vector.broadcast %cst_40 : f32 to vector<8x1xf32>
      %105 = arith.mulf %103, %104 : vector<8x1xf32>
      %106 = arith.subf %71, %105 : vector<8x1xf32>
      %107 = arith.mulf %60, %62 : vector<8x1xf32>
      %cst_41 = arith.constant 3.906250e-03 : f32
      %108 = vector.broadcast %cst_41 : f32 to vector<8x1xf32>
      %109 = arith.mulf %107, %108 : vector<8x1xf32>
      %110 = arith.subf %72, %109 : vector<8x1xf32>
      %111 = arith.mulf %63, %61 : vector<8x1xf32>
      %cst_42 = arith.constant 3.906250e-03 : f32
      %112 = vector.broadcast %cst_42 : f32 to vector<8x1xf32>
      %113 = arith.mulf %111, %112 : vector<8x1xf32>
      %114 = arith.subf %73, %113 : vector<8x1xf32>
      %115 = arith.mulf %63, %62 : vector<8x1xf32>
      %cst_43 = arith.constant 3.906250e-03 : f32
      %116 = vector.broadcast %cst_43 : f32 to vector<8x1xf32>
      %117 = arith.mulf %115, %116 : vector<8x1xf32>
      %118 = arith.subf %74, %117 : vector<8x1xf32>
      %cst_44 = arith.constant 1.1920929E-7 : f32
      %119 = vector.broadcast %cst_44 : f32 to vector<8x1xf32>
      %120 = arith.addf %98, %119 : vector<8x1xf32>
      %cst_45 = arith.constant 1.1920929E-7 : f32
      %121 = vector.broadcast %cst_45 : f32 to vector<8x1xf32>
      %122 = arith.addf %78, %121 : vector<8x1xf32>
      %123 = arith.divf %120, %122 : vector<8x1xf32>
      %124 = arith.mulf %123, %123 : vector<8x1xf32>
      %125 = arith.mulf %124, %78 : vector<8x1xf32>
      %cst_46 = arith.constant 1.1920929E-7 : f32
      %126 = vector.broadcast %cst_46 : f32 to vector<8x1xf32>
      %127 = arith.addf %125, %126 : vector<8x1xf32>
      %cst_47 = arith.constant 2.000000e+00 : f32
      %128 = vector.broadcast %cst_47 : f32 to vector<8x1xf32>
      %129 = arith.mulf %128, %123 : vector<8x1xf32>
      %130 = arith.mulf %129, %98 : vector<8x1xf32>
      %131 = arith.subf %125, %130 : vector<8x1xf32>
      %132 = arith.addf %131, %86 : vector<8x1xf32>
      %cst_48 = arith.constant 0.000000e+00 : f32
      %133 = vector.broadcast %cst_48 : f32 to vector<8x1xf32>
      %134 = arith.maximumf %132, %133 : vector<8x1xf32>
      %cst_49 = arith.constant 1.1920929E-7 : f32
      %135 = vector.broadcast %cst_49 : f32 to vector<8x1xf32>
      %136 = arith.addf %134, %135 : vector<8x1xf32>
      %137 = arith.divf %127, %136 : vector<8x1xf32>
      %138 = math.log %137 : vector<8x1xf32>
      %cst_50 = arith.constant 4.34294462 : f32
      %139 = vector.broadcast %cst_50 : f32 to vector<8x1xf32>
      %140 = arith.mulf %139, %138 : vector<8x1xf32>
      %cst_51 = arith.constant 1.1920929E-7 : f32
      %141 = vector.broadcast %cst_51 : f32 to vector<8x1xf32>
      %142 = arith.addf %102, %141 : vector<8x1xf32>
      %cst_52 = arith.constant 1.1920929E-7 : f32
      %143 = vector.broadcast %cst_52 : f32 to vector<8x1xf32>
      %144 = arith.addf %82, %143 : vector<8x1xf32>
      %145 = arith.divf %142, %144 : vector<8x1xf32>
      %146 = arith.mulf %145, %145 : vector<8x1xf32>
      %147 = arith.mulf %146, %82 : vector<8x1xf32>
      %cst_53 = arith.constant 1.1920929E-7 : f32
      %148 = vector.broadcast %cst_53 : f32 to vector<8x1xf32>
      %149 = arith.addf %147, %148 : vector<8x1xf32>
      %cst_54 = arith.constant 2.000000e+00 : f32
      %150 = vector.broadcast %cst_54 : f32 to vector<8x1xf32>
      %151 = arith.mulf %150, %145 : vector<8x1xf32>
      %152 = arith.mulf %151, %102 : vector<8x1xf32>
      %153 = arith.subf %147, %152 : vector<8x1xf32>
      %154 = arith.addf %153, %86 : vector<8x1xf32>
      %cst_55 = arith.constant 0.000000e+00 : f32
      %155 = vector.broadcast %cst_55 : f32 to vector<8x1xf32>
      %156 = arith.maximumf %154, %155 : vector<8x1xf32>
      %cst_56 = arith.constant 1.1920929E-7 : f32
      %157 = vector.broadcast %cst_56 : f32 to vector<8x1xf32>
      %158 = arith.addf %156, %157 : vector<8x1xf32>
      %159 = arith.divf %149, %158 : vector<8x1xf32>
      %160 = math.log %159 : vector<8x1xf32>
      %cst_57 = arith.constant 4.34294462 : f32
      %161 = vector.broadcast %cst_57 : f32 to vector<8x1xf32>
      %162 = arith.mulf %161, %160 : vector<8x1xf32>
      %cst_58 = arith.constant 1.1920929E-7 : f32
      %163 = vector.broadcast %cst_58 : f32 to vector<8x1xf32>
      %164 = arith.addf %106, %163 : vector<8x1xf32>
      %cst_59 = arith.constant 1.1920929E-7 : f32
      %165 = vector.broadcast %cst_59 : f32 to vector<8x1xf32>
      %166 = arith.addf %78, %165 : vector<8x1xf32>
      %167 = arith.divf %164, %166 : vector<8x1xf32>
      %168 = arith.mulf %167, %167 : vector<8x1xf32>
      %169 = arith.mulf %168, %78 : vector<8x1xf32>
      %cst_60 = arith.constant 1.1920929E-7 : f32
      %170 = vector.broadcast %cst_60 : f32 to vector<8x1xf32>
      %171 = arith.addf %169, %170 : vector<8x1xf32>
      %cst_61 = arith.constant 2.000000e+00 : f32
      %172 = vector.broadcast %cst_61 : f32 to vector<8x1xf32>
      %173 = arith.mulf %172, %167 : vector<8x1xf32>
      %174 = arith.mulf %173, %106 : vector<8x1xf32>
      %175 = arith.subf %169, %174 : vector<8x1xf32>
      %176 = arith.addf %175, %90 : vector<8x1xf32>
      %cst_62 = arith.constant 0.000000e+00 : f32
      %177 = vector.broadcast %cst_62 : f32 to vector<8x1xf32>
      %178 = arith.maximumf %176, %177 : vector<8x1xf32>
      %cst_63 = arith.constant 1.1920929E-7 : f32
      %179 = vector.broadcast %cst_63 : f32 to vector<8x1xf32>
      %180 = arith.addf %178, %179 : vector<8x1xf32>
      %181 = arith.divf %171, %180 : vector<8x1xf32>
      %182 = math.log %181 : vector<8x1xf32>
      %cst_64 = arith.constant 4.34294462 : f32
      %183 = vector.broadcast %cst_64 : f32 to vector<8x1xf32>
      %184 = arith.mulf %183, %182 : vector<8x1xf32>
      %cst_65 = arith.constant 1.1920929E-7 : f32
      %185 = vector.broadcast %cst_65 : f32 to vector<8x1xf32>
      %186 = arith.addf %110, %185 : vector<8x1xf32>
      %cst_66 = arith.constant 1.1920929E-7 : f32
      %187 = vector.broadcast %cst_66 : f32 to vector<8x1xf32>
      %188 = arith.addf %82, %187 : vector<8x1xf32>
      %189 = arith.divf %186, %188 : vector<8x1xf32>
      %190 = arith.mulf %189, %189 : vector<8x1xf32>
      %191 = arith.mulf %190, %82 : vector<8x1xf32>
      %cst_67 = arith.constant 1.1920929E-7 : f32
      %192 = vector.broadcast %cst_67 : f32 to vector<8x1xf32>
      %193 = arith.addf %191, %192 : vector<8x1xf32>
      %cst_68 = arith.constant 2.000000e+00 : f32
      %194 = vector.broadcast %cst_68 : f32 to vector<8x1xf32>
      %195 = arith.mulf %194, %189 : vector<8x1xf32>
      %196 = arith.mulf %195, %110 : vector<8x1xf32>
      %197 = arith.subf %191, %196 : vector<8x1xf32>
      %198 = arith.addf %197, %90 : vector<8x1xf32>
      %cst_69 = arith.constant 0.000000e+00 : f32
      %199 = vector.broadcast %cst_69 : f32 to vector<8x1xf32>
      %200 = arith.maximumf %198, %199 : vector<8x1xf32>
      %cst_70 = arith.constant 1.1920929E-7 : f32
      %201 = vector.broadcast %cst_70 : f32 to vector<8x1xf32>
      %202 = arith.addf %200, %201 : vector<8x1xf32>
      %203 = arith.divf %193, %202 : vector<8x1xf32>
      %204 = math.log %203 : vector<8x1xf32>
      %cst_71 = arith.constant 4.34294462 : f32
      %205 = vector.broadcast %cst_71 : f32 to vector<8x1xf32>
      %206 = arith.mulf %205, %204 : vector<8x1xf32>
      %cst_72 = arith.constant 1.1920929E-7 : f32
      %207 = vector.broadcast %cst_72 : f32 to vector<8x1xf32>
      %208 = arith.addf %114, %207 : vector<8x1xf32>
      %cst_73 = arith.constant 1.1920929E-7 : f32
      %209 = vector.broadcast %cst_73 : f32 to vector<8x1xf32>
      %210 = arith.addf %78, %209 : vector<8x1xf32>
      %211 = arith.divf %208, %210 : vector<8x1xf32>
      %212 = arith.mulf %211, %211 : vector<8x1xf32>
      %213 = arith.mulf %212, %78 : vector<8x1xf32>
      %cst_74 = arith.constant 1.1920929E-7 : f32
      %214 = vector.broadcast %cst_74 : f32 to vector<8x1xf32>
      %215 = arith.addf %213, %214 : vector<8x1xf32>
      %cst_75 = arith.constant 2.000000e+00 : f32
      %216 = vector.broadcast %cst_75 : f32 to vector<8x1xf32>
      %217 = arith.mulf %216, %211 : vector<8x1xf32>
      %218 = arith.mulf %217, %114 : vector<8x1xf32>
      %219 = arith.subf %213, %218 : vector<8x1xf32>
      %220 = arith.addf %219, %94 : vector<8x1xf32>
      %cst_76 = arith.constant 0.000000e+00 : f32
      %221 = vector.broadcast %cst_76 : f32 to vector<8x1xf32>
      %222 = arith.maximumf %220, %221 : vector<8x1xf32>
      %cst_77 = arith.constant 1.1920929E-7 : f32
      %223 = vector.broadcast %cst_77 : f32 to vector<8x1xf32>
      %224 = arith.addf %222, %223 : vector<8x1xf32>
      %225 = arith.divf %215, %224 : vector<8x1xf32>
      %226 = math.log %225 : vector<8x1xf32>
      %cst_78 = arith.constant 4.34294462 : f32
      %227 = vector.broadcast %cst_78 : f32 to vector<8x1xf32>
      %228 = arith.mulf %227, %226 : vector<8x1xf32>
      %cst_79 = arith.constant 1.1920929E-7 : f32
      %229 = vector.broadcast %cst_79 : f32 to vector<8x1xf32>
      %230 = arith.addf %118, %229 : vector<8x1xf32>
      %cst_80 = arith.constant 1.1920929E-7 : f32
      %231 = vector.broadcast %cst_80 : f32 to vector<8x1xf32>
      %232 = arith.addf %82, %231 : vector<8x1xf32>
      %233 = arith.divf %230, %232 : vector<8x1xf32>
      %234 = arith.mulf %233, %233 : vector<8x1xf32>
      %235 = arith.mulf %234, %82 : vector<8x1xf32>
      %cst_81 = arith.constant 1.1920929E-7 : f32
      %236 = vector.broadcast %cst_81 : f32 to vector<8x1xf32>
      %237 = arith.addf %235, %236 : vector<8x1xf32>
      %cst_82 = arith.constant 2.000000e+00 : f32
      %238 = vector.broadcast %cst_82 : f32 to vector<8x1xf32>
      %239 = arith.mulf %238, %233 : vector<8x1xf32>
      %240 = arith.mulf %239, %118 : vector<8x1xf32>
      %241 = arith.subf %235, %240 : vector<8x1xf32>
      %242 = arith.addf %241, %94 : vector<8x1xf32>
      %cst_83 = arith.constant 0.000000e+00 : f32
      %243 = vector.broadcast %cst_83 : f32 to vector<8x1xf32>
      %244 = arith.maximumf %242, %243 : vector<8x1xf32>
      %cst_84 = arith.constant 1.1920929E-7 : f32
      %245 = vector.broadcast %cst_84 : f32 to vector<8x1xf32>
      %246 = arith.addf %244, %245 : vector<8x1xf32>
      %247 = arith.divf %237, %246 : vector<8x1xf32>
      %248 = math.log %247 : vector<8x1xf32>
      %cst_85 = arith.constant 4.34294462 : f32
      %249 = vector.broadcast %cst_85 : f32 to vector<8x1xf32>
      %250 = arith.mulf %249, %248 : vector<8x1xf32>
      %cst_86 = arith.constant 0.000000e+00 : f32
      %251 = vector.broadcast %cst_86 : f32 to vector<8x1xf32>
      %252 = tpu.concatenate %140, %162, %184, %206, %228, %250, %251, %251 in 1 : vector<8x1xf32>, vector<8x1xf32>, vector<8x1xf32>, vector<8x1xf32>, vector<8x1xf32>, vector<8x1xf32>, vector<8x1xf32>, vector<8x1xf32> -> vector<8x8xf32>
      %c0_87 = arith.constant 0 : index
      %c0_88 = arith.constant 0 : index
      %253 = vector.load %arg7[%c0_87, %c0_88] : memref<8x8xf32, #tpu.memory_space<vmem>>, vector<8x8xf32>
      tpu.vector_store %arg7[%c0_87, %c0_88], %252 {strides = array<i32>} : memref<8x8xf32, #tpu.memory_space<vmem>>, vector<8x8xf32>,
    } else {
    }
    return
  }
  func.func @transform_0(%arg0: i32, %arg1: i32) -> (i32, i32) {
    %c0_i32 = arith.constant 0 : i32
    return %arg0, %arg1 : i32, i32
  }
  func.func @transform_1(%arg0: i32, %arg1: i32) -> (i32, i32) {
    %c1_i32 = arith.constant 1 : i32
    %0 = arith.addi %arg1, %c1_i32 : i32
    %c0_i32 = arith.constant 0 : i32
    return %arg0, %0 : i32, i32
  }
  func.func @transform_2(%arg0: i32, %arg1: i32) -> (i32, i32) {
    %c0_i32 = arith.constant 0 : i32
    return %arg0, %arg1 : i32, i32
  }
  func.func @transform_3(%arg0: i32, %arg1: i32) -> (i32, i32) {
    %c1_i32 = arith.constant 1 : i32
    %0 = arith.addi %arg1, %c1_i32 : i32
    %c0_i32 = arith.constant 0 : i32
    return %arg0, %0 : i32, i32
  }
  func.func @transform_4(%arg0: i32, %arg1: i32) -> (i32, i32) {
    %c0_i32 = arith.constant 0 : i32
    return %arg0, %arg1 : i32, i32
  }
  func.func @transform_5(%arg0: i32, %arg1: i32) -> (i32, i32) {
    %c0_i32 = arith.constant 0 : i32
    %c0_i32_0 = arith.constant 0 : i32
    return %arg0, %c0_i32 : i32, i32
  }
}

</mosaic_0001>

<llo_original>
// kernel: tpu_custom_call.1
$region0: #{tpu_custom_call.1}
  #allocation0 [shape = 'u32[]', space=smem, size = 0x4, offset = 0x4, fixed_abs, tag = 'smem constant byte address 0x4 - core index']
  #allocation1 [shape = 'u32[72,128]{1,0:T(1,128)}', space=vmem, size = 0x9000, scoped, tag = 'internal scratch']
  #allocation2 [shape = 'f32[8,16]{1,0:T(8,128)}', space=vmem, size = 0x1000, scoped, tag = 'scratch operand']
  %s0 = inlined_call_operand.hbm [shape: f32[2,512], index: 0, kind: input, shape index: {}]
  %s1 = inlined_call_operand.hbm [shape: f32[2,512], index: 1, kind: input, shape index: {}]
  %s2 = inlined_call_operand.hbm [shape: f32[2,512], index: 2, kind: input, shape index: {}]
  %s3 = inlined_call_operand.hbm [shape: f32[2,512], index: 3, kind: input, shape index: {}]
  %s4 = inlined_call_operand.hbm [shape: f32[2,256], index: 4, kind: input, shape index: {}]
  %s5 = inlined_call_operand.hbm [shape: f32[2,8], index: 5, kind: output, shape index: {}]
  %s6 = sld [smem:[#allocation0]]
  $region58: #{tpu_custom_call.1} parent=0
    _
  %s8 = ssub.s32 1, %s6
  %s9 = scalar_select 0, %s8, %s6
  $region1: #{tpu_custom_call.1} parent=0
    #allocation3 [shape = 'u8[8192]{0}', space=vmem, size = 0x2000, scoped, tag = 'input window, operand 0, single buffered']
    #allocation4 [shape = 's32[1]{0}', space=sflag, size = 0x4, scoped, tag = 'scoped memory for tpu_custom_call.1']
    #allocation5 [shape = 's32[1]{0}', space=sflag, size = 0x4, scoped, tag = 'scoped memory for tpu_custom_call.1']
    #allocation6 [shape = 'u8[8192]{0}', space=vmem, size = 0x2000, scoped, tag = 'input window, operand 1, single buffered']
    #allocation7 [shape = 's32[1]{0}', space=sflag, size = 0x4, scoped, tag = 'scoped memory for tpu_custom_call.1']
    #allocation8 [shape = 'u8[8192]{0}', space=vmem, size = 0x2000, scoped, tag = 'input window, operand 2, single buffered']
    #allocation9 [shape = 'u8[8192]{0}', space=vmem, size = 0x2000, scoped, tag = 'input window, operand 3, single buffered']
    #allocation10 [shape = 's32[1]{0}', space=sflag, size = 0x4, scoped, tag = 'scoped memory for tpu_custom_call.1']
    #allocation11 [shape = 'u8[8192]{0}', space=vmem, size = 0x2000, scoped, tag = 'input window, operand 4, single buffered']
    #allocation12 [shape = 'u8[4096]{0}', space=vmem, size = 0x1000, scoped, tag = 'output window, operand 0, single buffered']
    %10 = vsyncpa [#allocation4], 0
    %11 = vsyncpa [#allocation7], 0
    %12 = vsyncpa [#allocation10], 0
    %13 = vsyncpa [#allocation5], 0
    // Predicated region
    $region2: #{tpu_custom_call.1} parent=1 // pred_check
      _
    $region3: #{tpu_custom_call.1} parent=1 // pred_check_branch
      %15 = sbr.rel (0) target = $region5
    $region4: #{tpu_custom_call.1} parent=1 // pred_region
      %17 = vsyncadd [#allocation4], 192
      %s18 = sshll.u32 %s0, 4
      %s19 = int_to_ptr.hbm [resolvable:$true] %s18
      %s20 = sshll.u32 [#allocation3], 4
      %s21 = int_to_ptr.vmem [resolvable:$true] %s20
      %26 = dma.hbm_to_vmem [thread:$0]  %s19, 64, %s21, [#allocation4], 128, 64, 4
    $region5: #{tpu_custom_call.1} parent=1 // pred_fallthru
      _
    // Predicated region
    $region6: #{tpu_custom_call.1} parent=1 // pred_check
      _
    $region7: #{tpu_custom_call.1} parent=1 // pred_check_branch
      %28 = sbr.rel (0) target = $region9
    $region8: #{tpu_custom_call.1} parent=1 // pred_region
      %s29 = sadd.s32 0, 1
      %s30 = smul.u32 2, %s29
      %32 = vsyncadd [#allocation7], 192
      %s33 = smul.addr %s30, 2
      %s34 = scalar_lea.hbm %s1, %s33
      %s35 = sshll.u32 %s34, 4
      %s36 = int_to_ptr.hbm [resolvable:$true] %s35
      %s37 = sshll.u32 [#allocation6], 4
      %s38 = int_to_ptr.vmem [resolvable:$true] %s37
      %43 = dma.hbm_to_vmem [thread:$0]  %s36, 64, %s38, [#allocation7], 128, 64, 4
    $region9: #{tpu_custom_call.1} parent=1 // pred_fallthru
      _
    // Predicated region
    $region10: #{tpu_custom_call.1} parent=1 // pred_check
      _
    $region11: #{tpu_custom_call.1} parent=1 // pred_check_branch
      %45 = sbr.rel (0) target = $region13
    $region12: #{tpu_custom_call.1} parent=1 // pred_region
      %47 = vsyncadd [#allocation7], 192
      %s48 = sshll.u32 %s2, 4
      %s49 = int_to_ptr.hbm [resolvable:$true] %s48
      %s50 = sshll.u32 [#allocation8], 4
      %s51 = int_to_ptr.vmem [resolvable:$true] %s50
      %56 = dma.hbm_to_vmem [thread:$0]  %s49, 64, %s51, [#allocation7], 128, 64, 4
    $region13: #{tpu_custom_call.1} parent=1 // pred_fallthru
      _
    // Predicated region
    $region14: #{tpu_custom_call.1} parent=1 // pred_check
      _
    $region15: #{tpu_custom_call.1} parent=1 // pred_check_branch
      %58 = sbr.rel (0) target = $region17
    $region16: #{tpu_custom_call.1} parent=1 // pred_region
      %s59 = sadd.s32 0, 1
      %s60 = smul.u32 2, %s59
      %62 = vsyncadd [#allocation10], 192
      %s63 = smul.addr %s60, 2
      %s64 = scalar_lea.hbm %s3, %s63
      %s65 = sshll.u32 %s64, 4
      %s66 = int_to_ptr.hbm [resolvable:$true] %s65
      %s67 = sshll.u32 [#allocation9], 4
      %s68 = int_to_ptr.vmem [resolvable:$true] %s67
      %73 = dma.hbm_to_vmem [thread:$0]  %s66, 64, %s68, [#allocation10], 128, 64, 4
    $region17: #{tpu_custom_call.1} parent=1 // pred_fallthru
      _
    // Predicated region
    $region18: #{tpu_custom_call.1} parent=1 // pred_check
      _
    $region19: #{tpu_custom_call.1} parent=1 // pred_check_branch
      %75 = sbr.rel (0) target = $region21
    $region20: #{tpu_custom_call.1} parent=1 // pred_region
      %77 = vsyncadd [#allocation10], 192
      %s78 = sshll.u32 %s4, 4
      %s79 = int_to_ptr.hbm [resolvable:$true] %s78
      %s80 = sshll.u32 [#allocation11], 4
      %s81 = int_to_ptr.vmem [resolvable:$true] %s80
      %86 = dma.hbm_to_vmem [thread:$0]  %s79, 64, %s81, [#allocation10], 64, 64, 4
    $region21: #{tpu_custom_call.1} parent=1 // pred_fallthru
      _
    // Predicated region
    $region22: #{tpu_custom_call.1} parent=1 // pred_check
      _
    $region23: #{tpu_custom_call.1} parent=1 // pred_check_branch
      %88 = sbr.rel (0) target = $region25
    $region24: #{tpu_custom_call.1} parent=1 // pred_region
      %90 = dma.done [#allocation4], 256
    $region25: #{tpu_custom_call.1} parent=1 // pred_fallthru
      _
    // Predicated region
    $region26: #{tpu_custom_call.1} parent=1 // pred_check
      _
    $region27: #{tpu_custom_call.1} parent=1 // pred_check_branch
      %92 = sbr.rel (0) target = $region29
    $region28: #{tpu_custom_call.1} parent=1 // pred_region
      %94 = dma.done [#allocation7], 256
    $region29: #{tpu_custom_call.1} parent=1 // pred_fallthru
      _
    // Predicated region
    $region30: #{tpu_custom_call.1} parent=1 // pred_check
      _
    $region31: #{tpu_custom_call.1} parent=1 // pred_check_branch
      %96 = sbr.rel (0) target = $region33
    $region32: #{tpu_custom_call.1} parent=1 // pred_region
      %98 = dma.done [#allocation7], 256
    $region33: #{tpu_custom_call.1} parent=1 // pred_fallthru
      _
    // Predicated region
    $region34: #{tpu_custom_call.1} parent=1 // pred_check
      _
    $region35: #{tpu_custom_call.1} parent=1 // pred_check_branch
      %100 = sbr.rel (0) target = $region37
    $region36: #{tpu_custom_call.1} parent=1 // pred_region
      %102 = dma.done [#allocation10], 256
    $region37: #{tpu_custom_call.1} parent=1 // pred_fallthru
      _
    // Predicated region
    $region38: #{tpu_custom_call.1} parent=1 // pred_check
      _
    $region39: #{tpu_custom_call.1} parent=1 // pred_check_branch
      %104 = sbr.rel (0) target = $region41
    $region40: #{tpu_custom_call.1} parent=1 // pred_region
      %106 = dma.done [#allocation10], 256
    $region41: #{tpu_custom_call.1} parent=1 // pred_fallthru
      _
    %s107 = sadd.s32 0, 1
    %s108 = smul.u32 2, %s107
    %s109 = sadd.s32 0, 1
    %s110 = smul.u32 2, %s109
    %p111 = scmp.eq.s32.totalorder 0, 0
    // Predicated region
    $region42: #{tpu_custom_call.1} parent=1 // pred_check
      %p112 = pneg %p111
    $region43: #{tpu_custom_call.1} parent=1 // pred_check_branch
      %114 = sbr.rel (%p112) target = $region45
    $region44: #{tpu_custom_call.1} parent=1 // pred_region
      %vm115 = vcmask 130048
      %116 = vst.msk [vmem:[#allocation2] sm:$0xff] %vm115, 0.0
    $region45: #{tpu_custom_call.1} parent=1 // pred_fallthru
      _
    %v117 = vld [vmem:[#allocation3] sm:$0xf]
    %v118 = vld [vmem:[#allocation3 + $0x4] sm:$0xf]
    %v119 = vld [vmem:[#allocation3 + $0x8] sm:$0xf]
    %v120 = vld [vmem:[#allocation3 + $0xc] sm:$0xf]
    %v121 = vld [vmem:[#allocation6] sm:$0xf]
    %v122 = vld [vmem:[#allocation6 + $0x4] sm:$0xf]
    %v123 = vld [vmem:[#allocation6 + $0x8] sm:$0xf]
    %v124 = vld [vmem:[#allocation6 + $0xc] sm:$0xf]
    %v125 = vld [vmem:[#allocation8] sm:$0xf]
    %v126 = vld [vmem:[#allocation8 + $0x4] sm:$0xf]
    %v127 = vld [vmem:[#allocation8 + $0x8] sm:$0xf]
    %v128 = vld [vmem:[#allocation8 + $0xc] sm:$0xf]
    %v129 = vld [vmem:[#allocation9] sm:$0xf]
    %v130 = vld [vmem:[#allocation9 + $0x4] sm:$0xf]
    %v131 = vld [vmem:[#allocation9 + $0x8] sm:$0xf]
    %v132 = vld [vmem:[#allocation9 + $0xc] sm:$0xf]
    %v133 = vld [vmem:[#allocation11] sm:$0xf]
    %v134 = vld [vmem:[#allocation11 + $0x4] sm:$0xf]
    %v135 = vld [vmem:[#allocation11 + $0x8] sm:$0xf]
    %v136 = vld [vmem:[#allocation11 + $0xc] sm:$0xf]
    %141 = vst [vmem:[#allocation1] ss:$4 sm:$0xff] %v117
    %s142 = scalar_lea.vmem [#allocation1], 1
    %143 = vst [vmem:[%s142] ss:$4 sm:$0xff] %v118
    %s144 = scalar_lea.vmem [#allocation1], 2
    %145 = vst [vmem:[%s144] ss:$4 sm:$0xff] %v119
    %s146 = scalar_lea.vmem [#allocation1], 3
    %147 = vst [vmem:[%s146] ss:$4 sm:$0xff] %v120
    %v148 = vld.sshfl [vmem:[#allocation1] sm:$0xff pattern:$0x73625140]
    %v149 = vld.sshfl [vmem:[#allocation1 + $0x8] sm:$0xff pattern:$0x73625140]
    %v152 = vadd.f32 %v148, %v149
    %153 = vadd.xlane.f32.xlu0 %v152
    %v154 = vpop.xlane.xlu0 %153
    %159 = vst [vmem:[#allocation1] ss:$4 sm:$0xff] %v121
    %s160 = scalar_lea.vmem [#allocation1], 1
    %161 = vst [vmem:[%s160] ss:$4 sm:$0xff] %v122
    %s162 = scalar_lea.vmem [#allocation1], 2
    %163 = vst [vmem:[%s162] ss:$4 sm:$0xff] %v123
    %s164 = scalar_lea.vmem [#allocation1], 3
    %165 = vst [vmem:[%s164] ss:$4 sm:$0xff] %v124
    %v166 = vld.sshfl [vmem:[#allocation1] sm:$0xff pattern:$0x73625140]
    %v167 = vld.sshfl [vmem:[#allocation1 + $0x8] sm:$0xff pattern:$0x73625140]
    %v170 = vadd.f32 %v166, %v167
    %171 = vadd.xlane.f32.xlu0 %v170
    %v172 = vpop.xlane.xlu0 %171
    %177 = vst [vmem:[#allocation1] ss:$4 sm:$0xff] %v125
    %s178 = scalar_lea.vmem [#allocation1], 1
    %179 = vst [vmem:[%s178] ss:$4 sm:$0xff] %v126
    %s180 = scalar_lea.vmem [#allocation1], 2
    %181 = vst [vmem:[%s180] ss:$4 sm:$0xff] %v127
    %s182 = scalar_lea.vmem [#allocation1], 3
    %183 = vst [vmem:[%s182] ss:$4 sm:$0xff] %v128
    %v184 = vld.sshfl [vmem:[#allocation1] sm:$0xff pattern:$0x73625140]
    %v185 = vld.sshfl [vmem:[#allocation1 + $0x8] sm:$0xff pattern:$0x73625140]
    %v188 = vadd.f32 %v184, %v185
    %189 = vadd.xlane.f32.xlu0 %v188
    %v190 = vpop.xlane.xlu0 %189
    %195 = vst [vmem:[#allocation1] ss:$4 sm:$0xff] %v129
    %s196 = scalar_lea.vmem [#allocation1], 1
    %197 = vst [vmem:[%s196] ss:$4 sm:$0xff] %v130
    %s198 = scalar_lea.vmem [#allocation1], 2
    %199 = vst [vmem:[%s198] ss:$4 sm:$0xff] %v131
    %s200 = scalar_lea.vmem [#allocation1], 3
    %201 = vst [vmem:[%s200] ss:$4 sm:$0xff] %v132
    %v202 = vld.sshfl [vmem:[#allocation1] sm:$0xff pattern:$0x73625140]
    %v203 = vld.sshfl [vmem:[#allocation1 + $0x8] sm:$0xff pattern:$0x73625140]
    %v206 = vadd.f32 %v202, %v203
    %207 = vadd.xlane.f32.xlu0 %v206
    %v208 = vpop.xlane.xlu0 %207
    %213 = vst [vmem:[#allocation1] ss:$4 sm:$0xff] %v133
    %s214 = scalar_lea.vmem [#allocation1], 1
    %215 = vst [vmem:[%s214] ss:$4 sm:$0xff] %v134
    %s216 = scalar_lea.vmem [#allocation1], 2
    %217 = vst [vmem:[%s216] ss:$4 sm:$0xff] %v135
    %s218 = scalar_lea.vmem [#allocation1], 3
    %219 = vst [vmem:[%s218] ss:$4 sm:$0xff] %v136
    %v220 = vld.sshfl [vmem:[#allocation1] sm:$0xff pattern:$0x73625140]
    %v221 = vld.sshfl [vmem:[#allocation1 + $0x8] sm:$0xff pattern:$0x73625140]
    %v224 = vadd.f32 %v220, %v221
    %225 = vadd.xlane.f32.xlu0 %v224
    %v226 = vpop.xlane.xlu0 %225
    %v227 = vmul.f32 %v117, %v117
    %v228 = vmul.f32 %v118, %v118
    %v229 = vmul.f32 %v119, %v119
    %v230 = vmul.f32 %v120, %v120
    %235 = vst [vmem:[#allocation1] ss:$4 sm:$0xff] %v227
    %s236 = scalar_lea.vmem [#allocation1], 1
    %237 = vst [vmem:[%s236] ss:$4 sm:$0xff] %v228
    %s238 = scalar_lea.vmem [#allocation1], 2
    %239 = vst [vmem:[%s238] ss:$4 sm:$0xff] %v229
    %s240 = scalar_lea.vmem [#allocation1], 3
    %241 = vst [vmem:[%s240] ss:$4 sm:$0xff] %v230
    %v242 = vld.sshfl [vmem:[#allocation1] sm:$0xff pattern:$0x73625140]
    %v243 = vld.sshfl [vmem:[#allocation1 + $0x8] sm:$0xff pattern:$0x73625140]
    %v246 = vadd.f32 %v242, %v243
    %247 = vadd.xlane.f32.xlu0 %v246
    %v248 = vpop.xlane.xlu0 %247
    %v249 = vmul.f32 %v121, %v121
    %v250 = vmul.f32 %v122, %v122
    %v251 = vmul.f32 %v123, %v123
    %v252 = vmul.f32 %v124, %v124
    %257 = vst [vmem:[#allocation1] ss:$4 sm:$0xff] %v249
    %s258 = scalar_lea.vmem [#allocation1], 1
    %259 = vst [vmem:[%s258] ss:$4 sm:$0xff] %v250
    %s260 = scalar_lea.vmem [#allocation1], 2
    %261 = vst [vmem:[%s260] ss:$4 sm:$0xff] %v251
    %s262 = scalar_lea.vmem [#allocation1], 3
    %263 = vst [vmem:[%s262] ss:$4 sm:$0xff] %v252
    %v264 = vld.sshfl [vmem:[#allocation1] sm:$0xff pattern:$0x73625140]
    %v265 = vld.sshfl [vmem:[#allocation1 + $0x8] sm:$0xff pattern:$0x73625140]
    %v268 = vadd.f32 %v264, %v265
    %269 = vadd.xlane.f32.xlu0 %v268
    %v270 = vpop.xlane.xlu0 %269
    %v271 = vmul.f32 %v125, %v125
    %v272 = vmul.f32 %v126, %v126
    %v273 = vmul.f32 %v127, %v127
    %v274 = vmul.f32 %v128, %v128
    %279 = vst [vmem:[#allocation1] ss:$4 sm:$0xff] %v271
    %s280 = scalar_lea.vmem [#allocation1], 1
    %281 = vst [vmem:[%s280] ss:$4 sm:$0xff] %v272
    %s282 = scalar_lea.vmem [#allocation1], 2
    %283 = vst [vmem:[%s282] ss:$4 sm:$0xff] %v273
    %s284 = scalar_lea.vmem [#allocation1], 3
    %285 = vst [vmem:[%s284] ss:$4 sm:$0xff] %v274
    %v286 = vld.sshfl [vmem:[#allocation1] sm:$0xff pattern:$0x73625140]
    %v287 = vld.sshfl [vmem:[#allocation1 + $0x8] sm:$0xff pattern:$0x73625140]
    %v290 = vadd.f32 %v286, %v287
    %291 = vadd.xlane.f32.xlu0 %v290
    %v292 = vpop.xlane.xlu0 %291
    %v293 = vmul.f32 %v129, %v129
    %v294 = vmul.f32 %v130, %v130
    %v295 = vmul.f32 %v131, %v131
    %v296 = vmul.f32 %v132, %v132
    %301 = vst [vmem:[#allocation1] ss:$4 sm:$0xff] %v293
    %s302 = scalar_lea.vmem [#allocation1], 1
    %303 = vst [vmem:[%s302] ss:$4 sm:$0xff] %v294
    %s304 = scalar_lea.vmem [#allocation1], 2
    %305 = vst [vmem:[%s304] ss:$4 sm:$0xff] %v295
    %s306 = scalar_lea.vmem [#allocation1], 3
    %307 = vst [vmem:[%s306] ss:$4 sm:$0xff] %v296
    %v308 = vld.sshfl [vmem:[#allocation1] sm:$0xff pattern:$0x73625140]
    %v309 = vld.sshfl [vmem:[#allocation1 + $0x8] sm:$0xff pattern:$0x73625140]
    %v312 = vadd.f32 %v308, %v309
    %313 = vadd.xlane.f32.xlu0 %v312
    %v314 = vpop.xlane.xlu0 %313
    %v315 = vmul.f32 %v133, %v133
    %v316 = vmul.f32 %v134, %v134
    %v317 = vmul.f32 %v135, %v135
    %v318 = vmul.f32 %v136, %v136
    %323 = vst [vmem:[#allocation1] ss:$4 sm:$0xff] %v315
    %s324 = scalar_lea.vmem [#allocation1], 1
    %325 = vst [vmem:[%s324] ss:$4 sm:$0xff] %v316
    %s326 = scalar_lea.vmem [#allocation1], 2
    %327 = vst [vmem:[%s326] ss:$4 sm:$0xff] %v317
    %s328 = scalar_lea.vmem [#allocation1], 3
    %329 = vst [vmem:[%s328] ss:$4 sm:$0xff] %v318
    %v330 = vld.sshfl [vmem:[#allocation1] sm:$0xff pattern:$0x73625140]
    %v331 = vld.sshfl [vmem:[#allocation1 + $0x8] sm:$0xff pattern:$0x73625140]
    %v334 = vadd.f32 %v330, %v331
    %335 = vadd.xlane.f32.xlu0 %v334
    %v336 = vpop.xlane.xlu0 %335
    %v337 = vmul.f32 %v117, %v125
    %v338 = vmul.f32 %v118, %v126
    %v339 = vmul.f32 %v119, %v127
    %v340 = vmul.f32 %v120, %v128
    %345 = vst [vmem:[#allocation1] ss:$4 sm:$0xff] %v337
    %s346 = scalar_lea.vmem [#allocation1], 1
    %347 = vst [vmem:[%s346] ss:$4 sm:$0xff] %v338
    %s348 = scalar_lea.vmem [#allocation1], 2
    %349 = vst [vmem:[%s348] ss:$4 sm:$0xff] %v339
    %s350 = scalar_lea.vmem [#allocation1], 3
    %351 = vst [vmem:[%s350] ss:$4 sm:$0xff] %v340
    %v352 = vld.sshfl [vmem:[#allocation1] sm:$0xff pattern:$0x73625140]
    %v353 = vld.sshfl [vmem:[#allocation1 + $0x8] sm:$0xff pattern:$0x73625140]
    %v356 = vadd.f32 %v352, %v353
    %357 = vadd.xlane.f32.xlu0 %v356
    %v358 = vpop.xlane.xlu0 %357
    %v359 = vmul.f32 %v117, %v129
    %v360 = vmul.f32 %v118, %v130
    %v361 = vmul.f32 %v119, %v131
    %v362 = vmul.f32 %v120, %v132
    %367 = vst [vmem:[#allocation1] ss:$4 sm:$0xff] %v359
    %s368 = scalar_lea.vmem [#allocation1], 1
    %369 = vst [vmem:[%s368] ss:$4 sm:$0xff] %v360
    %s370 = scalar_lea.vmem [#allocation1], 2
    %371 = vst [vmem:[%s370] ss:$4 sm:$0xff] %v361
    %s372 = scalar_lea.vmem [#allocation1], 3
    %373 = vst [vmem:[%s372] ss:$4 sm:$0xff] %v362
    %v374 = vld.sshfl [vmem:[#allocation1] sm:$0xff pattern:$0x73625140]
    %v375 = vld.sshfl [vmem:[#allocation1 + $0x8] sm:$0xff pattern:$0x73625140]
    %v378 = vadd.f32 %v374, %v375
    %379 = vadd.xlane.f32.xlu0 %v378
    %v380 = vpop.xlane.xlu0 %379
    %v381 = vmul.f32 %v121, %v125
    %v382 = vmul.f32 %v122, %v126
    %v383 = vmul.f32 %v123, %v127
    %v384 = vmul.f32 %v124, %v128
    %389 = vst [vmem:[#allocation1] ss:$4 sm:$0xff] %v381
    %s390 = scalar_lea.vmem [#allocation1], 1
    %391 = vst [vmem:[%s390] ss:$4 sm:$0xff] %v382
    %s392 = scalar_lea.vmem [#allocation1], 2
    %393 = vst [vmem:[%s392] ss:$4 sm:$0xff] %v383
    %s394 = scalar_lea.vmem [#allocation1], 3
    %395 = vst [vmem:[%s394] ss:$4 sm:$0xff] %v384
    %v396 = vld.sshfl [vmem:[#allocation1] sm:$0xff pattern:$0x73625140]
    %v397 = vld.sshfl [vmem:[#allocation1 + $0x8] sm:$0xff pattern:$0x73625140]
    %v400 = vadd.f32 %v396, %v397
    %401 = vadd.xlane.f32.xlu0 %v400
    %v402 = vpop.xlane.xlu0 %401
    %v403 = vmul.f32 %v121, %v129
    %v404 = vmul.f32 %v122, %v130
    %v405 = vmul.f32 %v123, %v131
    %v406 = vmul.f32 %v124, %v132
    %411 = vst [vmem:[#allocation1] ss:$4 sm:$0xff] %v403
    %s412 = scalar_lea.vmem [#allocation1], 1
    %413 = vst [vmem:[%s412] ss:$4 sm:$0xff] %v404
    %s414 = scalar_lea.vmem [#allocation1], 2
    %415 = vst [vmem:[%s414] ss:$4 sm:$0xff] %v405
    %s416 = scalar_lea.vmem [#allocation1], 3
    %417 = vst [vmem:[%s416] ss:$4 sm:$0xff] %v406
    %v418 = vld.sshfl [vmem:[#allocation1] sm:$0xff pattern:$0x73625140]
    %v419 = vld.sshfl [vmem:[#allocation1 + $0x8] sm:$0xff pattern:$0x73625140]
    %v422 = vadd.f32 %v418, %v419
    %423 = vadd.xlane.f32.xlu0 %v422
    %v424 = vpop.xlane.xlu0 %423
    %v425 = vmul.f32 %v133, %v125
    %v426 = vmul.f32 %v134, %v126
    %v427 = vmul.f32 %v135, %v127
    %v428 = vmul.f32 %v136, %v128
    %433 = vst [vmem:[#allocation1] ss:$4 sm:$0xff] %v425
    %s434 = scalar_lea.vmem [#allocation1], 1
    %435 = vst [vmem:[%s434] ss:$4 sm:$0xff] %v426
    %s436 = scalar_lea.vmem [#allocation1], 2
    %437 = vst [vmem:[%s436] ss:$4 sm:$0xff] %v427
    %s438 = scalar_lea.vmem [#allocation1], 3
    %439 = vst [vmem:[%s438] ss:$4 sm:$0xff] %v428
    %v440 = vld.sshfl [vmem:[#allocation1] sm:$0xff pattern:$0x73625140]
    %v441 = vld.sshfl [vmem:[#allocation1 + $0x8] sm:$0xff pattern:$0x73625140]
    %v444 = vadd.f32 %v440, %v441
    %445 = vadd.xlane.f32.xlu0 %v444
    %v446 = vpop.xlane.xlu0 %445
    %v447 = vmul.f32 %v133, %v129
    %v448 = vmul.f32 %v134, %v130
    %v449 = vmul.f32 %v135, %v131
    %v450 = vmul.f32 %v136, %v132
    %455 = vst [vmem:[#allocation1] ss:$4 sm:$0xff] %v447
    %s456 = scalar_lea.vmem [#allocation1], 1
    %457 = vst [vmem:[%s456] ss:$4 sm:$0xff] %v448
    %s458 = scalar_lea.vmem [#allocation1], 2
    %459 = vst [vmem:[%s458] ss:$4 sm:$0xff] %v449
    %s460 = scalar_lea.vmem [#allocation1], 3
    %461 = vst [vmem:[%s460] ss:$4 sm:$0xff] %v450
    %v462 = vld.sshfl [vmem:[#allocation1] sm:$0xff pattern:$0x73625140]
    %v463 = vld.sshfl [vmem:[#allocation1 + $0x8] sm:$0xff pattern:$0x73625140]
    %v466 = vadd.f32 %v462, %v463
    %467 = vadd.xlane.f32.xlu0 %v466
    %v468 = vpop.xlane.xlu0 %467
    %v469 = vld [vmem:[#allocation2] sm:$0xff]
    %vm470 = vcmask 7168
    %v471 = vsel %vm470, %v154, %v172
    %vm472 = vcmask 15360
    %v473 = vsel %vm472, %v471, %v190
    %vm474 = vcmask 23552
    %v475 = vsel %vm474, %v473, %v208
    %vm476 = vcmask 31744
    %v477 = vsel %vm476, %v475, %v226
    %vm478 = vcmask 39936
    %v479 = vsel %vm478, %v477, %v248
    %vm480 = vcmask 48128
    %v481 = vsel %vm480, %v479, %v270
    %vm482 = vcmask 56320
    %v483 = vsel %vm482, %v481, %v292
    %vm484 = vcmask 64512
    %v485 = vsel %vm484, %v483, %v314
    %vm486 = vcmask 72704
    %v487 = vsel %vm486, %v485, %v336
    %vm488 = vcmask 80896
    %v489 = vsel %vm488, %v487, %v358
    %vm490 = vcmask 89088
    %v491 = vsel %vm490, %v489, %v380
    %vm492 = vcmask 97280
    %v493 = vsel %vm492, %v491, %v402
    %vm494 = vcmask 105472
    %v495 = vsel %vm494, %v493, %v424
    %vm496 = vcmask 113664
    %v497 = vsel %vm496, %v495, %v446
    %vm498 = vcmask 121856
    %v499 = vsel %vm498, %v497, %v468
    %v500 = vadd.f32 %v469, %v499
    %vm501 = vcmask 130048
    %502 = vst.msk [vmem:[#allocation2] sm:$0xff] %vm501, %v500
    // Predicated region
    $region46: #{tpu_custom_call.1} parent=1 // pred_check
      %p503 = pneg %p111
    $region47: #{tpu_custom_call.1} parent=1 // pred_check_branch
      %505 = sbr.rel (%p503) target = $region49
    $region48: #{tpu_custom_call.1} parent=1 // pred_region
      %v506 = vld [vmem:[#allocation2] sm:$0xff]
      %v507 = vmul.f32 %v506, %v506
      %v508 = vmul.f32 %v507, 0.00390625
      %510 = vrot.lane.b32.xlu0 %v508, 5
      %v511 = vpop.permute.xlu0 %510
      %v513 = vsub.f32 %v506, %v511
      %515 = vrot.lane.b32.xlu0 %v506, 126
      %v516 = vpop.permute.xlu0 %515
      %v518 = vmul.f32 %v506, %v516
      %v519 = vmul.f32 %v518, 0.00390625
      %521 = vrot.lane.b32.xlu0 %v519, 10
      %v522 = vpop.permute.xlu0 %521
      %v524 = vsub.f32 %v506, %v522
      %525 = vrot.lane.b32.xlu0 %v506, 125
      %v526 = vpop.permute.xlu0 %525
      %v528 = vmul.f32 %v506, %v526
      %v529 = vmul.f32 %v528, 0.00390625
      %531 = vrot.lane.b32.xlu0 %v529, 11
      %v532 = vpop.permute.xlu0 %531
      %v534 = vsub.f32 %v506, %v532
      %535 = vrot.lane.b32.xlu0 %v506, 127
      %v536 = vpop.permute.xlu0 %535
      %v538 = vmul.f32 %v506, %v536
      %v539 = vmul.f32 %v538, 0.00390625
      %541 = vrot.lane.b32.xlu0 %v539, 11
      %v542 = vpop.permute.xlu0 %541
      %v544 = vsub.f32 %v506, %v542
      %545 = vrot.lane.b32.xlu0 %v519, 12
      %v546 = vpop.permute.xlu0 %545
      %v548 = vsub.f32 %v506, %v546
      %549 = vrot.lane.b32.xlu0 %v506, 2
      %v550 = vpop.permute.xlu0 %549
      %v552 = vmul.f32 %v506, %v550
      %v553 = vmul.f32 %v552, 0.00390625
      %555 = vrot.lane.b32.xlu0 %v553, 10
      %v556 = vpop.permute.xlu0 %555
      %v558 = vsub.f32 %v506, %v556
      %559 = vrot.lane.b32.xlu0 %v506, 1
      %v560 = vpop.permute.xlu0 %559
      %v562 = vmul.f32 %v506, %v560
      %v563 = vmul.f32 %v562, 0.00390625
      %565 = vrot.lane.b32.xlu0 %v563, 11
      %v566 = vpop.permute.xlu0 %565
      %v568 = vsub.f32 %v506, %v566
      %v569 = vadd.f32 %v524, 1.1920929e-07
      %v570 = vadd.f32 %v513, 1.1920929e-07
      %572 = vrot.lane.b32.xlu0 %v570, 3
      %v573 = vpop.permute.xlu0 %572
      %v575 = vrcp.pop %v573
      %v576 = vmul.f32 %v573, %v575
      %v577 = vsub.f32 1.0, %v576
      %v578 = vmul.f32 %v575, %v577
      %v579 = vadd.f32 %v575, %v578
      %vm580 = vweird.f32 %v573
      %vm581 = vweird.f32 %v575
      %vm582 = vmor %vm580, %vm581
      %v583 = vsel %vm582, %v575, %v579
      %v584 = vand.u32 2147483647, %v573
      %vm585 = vcmp.eq.f32.partialorder %v584, 8.507059e+37
      %v586 = vand.u32 %v573, 2147483648
      %v587 = vor.u32 1.1754944e-38, %v586
      %v588 = vsel %vm585, %v587, %v583
      %v589 = vmul.f32 %v569, %v588
      %v590 = vmul.f32 %v589, %v589
      %592 = vrot.lane.b32.xlu0 %v513, 3
      %v593 = vpop.permute.xlu0 %592
      %v595 = vmul.f32 %v590, %v593
      %v596 = vadd.f32 %v595, 1.1920929e-07
      %v597 = vmul.f32 %v589, 2.0
      %v598 = vmul.f32 %v597, %v524
      %v599 = vsub.f32 %v595, %v598
      %600 = vrot.lane.b32.xlu0 %v513, 5
      %v601 = vpop.permute.xlu0 %600
      %v603 = vadd.f32 %v599, %v601
      %v604 = vmax.f32 %v603, 0.0
      %v605 = vadd.f32 %v604, 1.1920929e-07
      %v606 = vrcp.pop %v605
      %v607 = vmul.f32 %v605, %v606
      %v608 = vsub.f32 1.0, %v607
      %v609 = vmul.f32 %v606, %v608
      %v610 = vadd.f32 %v606, %v609
      %vm611 = vweird.f32 %v605
      %vm612 = vweird.f32 %v606
      %vm613 = vmor %vm611, %vm612
      %v614 = vsel %vm613, %v606, %v610
      %v615 = vand.u32 2147483647, %v605
      %vm616 = vcmp.eq.f32.partialorder %v615, 8.507059e+37
      %v617 = vand.u32 %v605, 2147483648
      %v618 = vor.u32 1.1754944e-38, %v617
      %v619 = vsel %vm616, %v618, %v614
      %v620 = vmul.f32 %v596, %v619
      %v621 = vlog2.pop %v620
      %v622 = vmul.f32 %v621, 0.6931472
      %v623 = vmul.f32 %v622, 4.3429446
      %v624 = vadd.f32 %v534, 1.1920929e-07
      %v625 = vmul.f32 %v624, %v588
      %v626 = vmul.f32 %v625, %v625
      %v627 = vmul.f32 %v626, %v593
      %v628 = vadd.f32 %v627, 1.1920929e-07
      %v629 = vmul.f32 %v625, 2.0
      %v630 = vmul.f32 %v629, %v534
      %v631 = vsub.f32 %v627, %v630
      %632 = vrot.lane.b32.xlu0 %v513, 6
      %v633 = vpop.permute.xlu0 %632
      %v635 = vadd.f32 %v631, %v633
      %v636 = vmax.f32 %v635, 0.0
      %v637 = vadd.f32 %v636, 1.1920929e-07
      %v638 = vrcp.pop %v637
      %v639 = vmul.f32 %v637, %v638
      %v640 = vsub.f32 1.0, %v639
      %v641 = vmul.f32 %v638, %v640
      %v642 = vadd.f32 %v638, %v641
      %vm643 = vweird.f32 %v637
      %vm644 = vweird.f32 %v638
      %vm645 = vmor %vm643, %vm644
      %v646 = vsel %vm645, %v638, %v642
      %v647 = vand.u32 2147483647, %v637
      %vm648 = vcmp.eq.f32.partialorder %v647, 8.507059e+37
      %v649 = vand.u32 %v637, 2147483648
      %v650 = vor.u32 1.1754944e-38, %v649
      %v651 = vsel %vm648, %v650, %v646
      %v652 = vmul.f32 %v628, %v651
      %v653 = vlog2.pop %v652
      %v654 = vmul.f32 %v653, 0.6931472
      %v655 = vmul.f32 %v654, 4.3429446
      %v656 = vadd.f32 %v544, 1.1920929e-07
      %657 = vrot.lane.b32.xlu0 %v570, 5
      %v658 = vpop.permute.xlu0 %657
      %v660 = vrcp.pop %v658
      %v661 = vmul.f32 %v658, %v660
      %v662 = vsub.f32 1.0, %v661
      %v663 = vmul.f32 %v660, %v662
      %v664 = vadd.f32 %v660, %v663
      %vm665 = vweird.f32 %v658
      %vm666 = vweird.f32 %v660
      %vm667 = vmor %vm665, %vm666
      %v668 = vsel %vm667, %v660, %v664
      %v669 = vand.u32 2147483647, %v658
      %vm670 = vcmp.eq.f32.partialorder %v669, 8.507059e+37
      %v671 = vand.u32 %v658, 2147483648
      %v672 = vor.u32 1.1754944e-38, %v671
      %v673 = vsel %vm670, %v672, %v668
      %v674 = vmul.f32 %v656, %v673
      %v675 = vmul.f32 %v674, %v674
      %v676 = vmul.f32 %v675, %v601
      %v677 = vadd.f32 %v676, 1.1920929e-07
      %v678 = vmul.f32 %v674, 2.0
      %v679 = vmul.f32 %v678, %v544
      %v680 = vsub.f32 %v676, %v679
      %v681 = vadd.f32 %v680, %v633
      %v682 = vmax.f32 %v681, 0.0
      %v683 = vadd.f32 %v682, 1.1920929e-07
      %v684 = vrcp.pop %v683
      %v685 = vmul.f32 %v683, %v684
      %v686 = vsub.f32 1.0, %v685
      %v687 = vmul.f32 %v684, %v686
      %v688 = vadd.f32 %v684, %v687
      %vm689 = vweird.f32 %v683
      %vm690 = vweird.f32 %v684
      %vm691 = vmor %vm689, %vm690
      %v692 = vsel %vm691, %v684, %v688
      %v693 = vand.u32 2147483647, %v683
      %vm694 = vcmp.eq.f32.partialorder %v693, 8.507059e+37
      %v695 = vand.u32 %v683, 2147483648
      %v696 = vor.u32 1.1754944e-38, %v695
      %v697 = vsel %vm694, %v696, %v692
      %v698 = vmul.f32 %v677, %v697
      %v699 = vlog2.pop %v698
      %v700 = vmul.f32 %v699, 0.6931472
      %v701 = vmul.f32 %v700, 4.3429446
      %v702 = vadd.f32 %v548, 1.1920929e-07
      %v703 = vmul.f32 %v702, %v673
      %v704 = vmul.f32 %v703, %v703
      %v705 = vmul.f32 %v704, %v601
      %v706 = vadd.f32 %v705, 1.1920929e-07
      %v707 = vmul.f32 %v703, 2.0
      %v708 = vmul.f32 %v707, %v548
      %v709 = vsub.f32 %v705, %v708
      %710 = vrot.lane.b32.xlu0 %v513, 7
      %v711 = vpop.permute.xlu0 %710
      %v713 = vadd.f32 %v709, %v711
      %v714 = vmax.f32 %v713, 0.0
      %v715 = vadd.f32 %v714, 1.1920929e-07
      %v716 = vrcp.pop %v715
      %v717 = vmul.f32 %v715, %v716
      %v718 = vsub.f32 1.0, %v717
      %v719 = vmul.f32 %v716, %v718
      %v720 = vadd.f32 %v716, %v719
      %vm721 = vweird.f32 %v715
      %vm722 = vweird.f32 %v716
      %vm723 = vmor %vm721, %vm722
      %v724 = vsel %vm723, %v716, %v720
      %v725 = vand.u32 2147483647, %v715
      %vm726 = vcmp.eq.f32.partialorder %v725, 8.507059e+37
      %v727 = vand.u32 %v715, 2147483648
      %v728 = vor.u32 1.1754944e-38, %v727
      %v729 = vsel %vm726, %v728, %v724
      %v730 = vmul.f32 %v706, %v729
      %v731 = vlog2.pop %v730
      %v732 = vmul.f32 %v731, 0.6931472
      %v733 = vmul.f32 %v732, 4.3429446
      %v734 = vadd.f32 %v558, 1.1920929e-07
      %735 = vrot.lane.b32.xlu0 %v570, 7
      %v736 = vpop.permute.xlu0 %735
      %v738 = vrcp.pop %v736
      %v739 = vmul.f32 %v736, %v738
      %v740 = vsub.f32 1.0, %v739
      %v741 = vmul.f32 %v738, %v740
      %v742 = vadd.f32 %v738, %v741
      %vm743 = vweird.f32 %v736
      %vm744 = vweird.f32 %v738
      %vm745 = vmor %vm743, %vm744
      %v746 = vsel %vm745, %v738, %v742
      %v747 = vand.u32 2147483647, %v736
      %vm748 = vcmp.eq.f32.partialorder %v747, 8.507059e+37
      %v749 = vand.u32 %v736, 2147483648
      %v750 = vor.u32 1.1754944e-38, %v749
      %v751 = vsel %vm748, %v750, %v746
      %v752 = vmul.f32 %v734, %v751
      %v753 = vmul.f32 %v752, %v752
      %v754 = vmul.f32 %v753, %v711
      %v755 = vadd.f32 %v754, 1.1920929e-07
      %v756 = vmul.f32 %v752, 2.0
      %v757 = vmul.f32 %v756, %v558
      %v758 = vsub.f32 %v754, %v757
      %v759 = vadd.f32 %v758, %v601
      %v760 = vmax.f32 %v759, 0.0
      %v761 = vadd.f32 %v760, 1.1920929e-07
      %v762 = vrcp.pop %v761
      %v763 = vmul.f32 %v761, %v762
      %v764 = vsub.f32 1.0, %v763
      %v765 = vmul.f32 %v762, %v764
      %v766 = vadd.f32 %v762, %v765
      %vm767 = vweird.f32 %v761
      %vm768 = vweird.f32 %v762
      %vm769 = vmor %vm767, %vm768
      %v770 = vsel %vm769, %v762, %v766
      %v771 = vand.u32 2147483647, %v761
      %vm772 = vcmp.eq.f32.partialorder %v771, 8.507059e+37
      %v773 = vand.u32 %v761, 2147483648
      %v774 = vor.u32 1.1754944e-38, %v773
      %v775 = vsel %vm772, %v774, %v770
      %v776 = vmul.f32 %v755, %v775
      %v777 = vlog2.pop %v776
      %v778 = vmul.f32 %v777, 0.6931472
      %v779 = vmul.f32 %v778, 4.3429446
      %v780 = vadd.f32 %v568, 1.1920929e-07
      %v781 = vmul.f32 %v780, %v751
      %v782 = vmul.f32 %v781, %v781
      %v783 = vmul.f32 %v782, %v711
      %v784 = vadd.f32 %v783, 1.1920929e-07
      %v785 = vmul.f32 %v781, 2.0
      %v786 = vmul.f32 %v785, %v568
      %v787 = vsub.f32 %v783, %v786
      %v788 = vadd.f32 %v787, %v633
      %v789 = vmax.f32 %v788, 0.0
      %v790 = vadd.f32 %v789, 1.1920929e-07
      %v791 = vrcp.pop %v790
      %v792 = vmul.f32 %v790, %v791
      %v793 = vsub.f32 1.0, %v792
      %v794 = vmul.f32 %v791, %v793
      %v795 = vadd.f32 %v791, %v794
      %vm796 = vweird.f32 %v790
      %vm797 = vweird.f32 %v791
      %vm798 = vmor %vm796, %vm797
      %v799 = vsel %vm798, %v791, %v795
      %v800 = vand.u32 2147483647, %v790
      %vm801 = vcmp.eq.f32.partialorder %v800, 8.507059e+37
      %v802 = vand.u32 %v790, 2147483648
      %v803 = vor.u32 1.1754944e-38, %v802
      %v804 = vsel %vm801, %v803, %v799
      %v805 = vmul.f32 %v784, %v804
      %v806 = vlog2.pop %v805
      %v807 = vmul.f32 %v806, 0.6931472
      %v808 = vmul.f32 %v807, 4.3429446
      %810 = vrot.lane.b32.xlu0 %v623, 118
      %v811 = vpop.permute.xlu0 %810
      %814 = vrot.lane.b32.xlu0 %v655, 118
      %v815 = vpop.permute.xlu0 %814
      %818 = vrot.lane.b32.xlu0 %v701, 118
      %v819 = vpop.permute.xlu0 %818
      %822 = vrot.lane.b32.xlu0 %v733, 118
      %v823 = vpop.permute.xlu0 %822
      %826 = vrot.lane.b32.xlu0 %v779, 118
      %v827 = vpop.permute.xlu0 %826
      %830 = vrot.lane.b32.xlu0 %v808, 118
      %v831 = vpop.permute.xlu0 %830
      %v833 = vsel %vm470, %v811, %v815
      %v834 = vsel %vm472, %v833, %v819
      %v835 = vsel %vm474, %v834, %v823
      %v836 = vsel %vm476, %v835, %v827
      %v837 = vsel %vm478, %v836, %v831
      %v838 = vsel %vm480, %v837, 0.0
      %v839 = vsel %vm482, %v838, 0.0
      %840 = vst.msk [vmem:[#allocation12] sm:$0xff] %vm484, %v839
    $region49: #{tpu_custom_call.1} parent=1 // pred_fallthru
      _
    // Predicated region
    $region50: #{tpu_custom_call.1} parent=1 // pred_check
      _
    $region51: #{tpu_custom_call.1} parent=1 // pred_check_branch
      %842 = sbr.rel (0) target = $region53
    $region52: #{tpu_custom_call.1} parent=1 // pred_region
      %844 = vsyncadd [#allocation5], 96
      %s845 = sshll.u32 [#allocation12], 4
      %s846 = int_to_ptr.vmem [resolvable:$true] %s845
      %s847 = sshll.u32 %s5, 4
      %s848 = int_to_ptr.hbm [resolvable:$true] %s847
      %853 = dma.vmem_to_hbm [thread:$0]  %s846, 32, %s848, [#allocation5], 32, 32, 2
    $region53: #{tpu_custom_call.1} parent=1 // pred_fallthru
      _
    // Predicated region
    $region54: #{tpu_custom_call.1} parent=1 // pred_check
      _
    $region55: #{tpu_custom_call.1} parent=1 // pred_check_branch
      %855 = sbr.rel (0) target = $region57
    $region56: #{tpu_custom_call.1} parent=1 // pred_region
      %857 = dma.done [#allocation5], 128
    $region57: #{tpu_custom_call.1} parent=1 // pred_fallthru
      _
    %858 = vsyncpa [#allocation4], 1
    %859 = vsyncpa [#allocation7], 1
    %860 = vsyncpa [#allocation10], 1
    %861 = vsyncpa [#allocation5], 1

</llo_original>
